<compile_context>
chip_gen: v6e
topology: v6e:2x2x1
jax: 0.10.0
libtpu: 0.0.40
codegen_flags: <defaults>
</compile_context>

<pallas_src>
import jax
import jax.numpy as jnp
from jax.experimental import pallas as pl
from jax.experimental.pallas import tpu as pltpu

EPS = 1e-12


def _df_loss_kernel(mask_ref, attn_ref, out_ref):
    """Grid step (r, c): reduce one (tile_rows, tile_cols) block to a
    lane-aligned (8, tile_cols) f32 partial and write it to this step's own
    output block (no cross-step state)."""
    # Upcast to f32 in-vreg (inputs may be bf16 / int8); keep all arithmetic
    # f32 so 1e-12 and small (1 - a) values keep precision, and so v5e stays
    # on its f32 VPU/EUP paths.
    m = mask_ref[...].astype(jnp.float32)
    a = attn_ref[...].astype(jnp.float32)
    contrib = -(1.0 - m) * jnp.log(1.0 - a + EPS)          # (tile_rows, tile_cols)

    # Fold sublane groups of 8 onto an (8, tile_cols) partial.  The reshape
    # only splits the major (row) axis, so it is layout-preserving and the
    # sum is pure VPU work (no cross-lane reduce inside the kernel).
    tr, tc = contrib.shape
    out_ref[...] = contrib.reshape(tr // 8, 8, tc).sum(axis=0)[None, None]


def df_loss_pallas(attention, mask, tile_rows=512, tile_cols=2048):
    """sum(-(1 - mask) * log(1 - attention + 1e-12)) as a Pallas TPU kernel.

    attention: (rows, cols), any float dtype (streamed natively, upcast
               in-kernel).
    mask:      (rows, cols) or (rows, cols, 1), any float/int dtype
               (narrow dtypes like bf16/int8 are exact for {0,1} masks and
               halve/third the mask HBM traffic).
    Returns a scalar float32.
    """
    if mask.ndim == attention.ndim + 1 and mask.shape[-1] == 1:
        mask = jnp.squeeze(mask, axis=-1)
    rows, cols = attention.shape
    assert mask.shape == (rows, cols), (mask.shape, attention.shape)

    # Clamp tiles to the array extents.
    tile_rows = min(tile_rows, rows)
    tile_cols = min(tile_cols, cols)
    # Keep >= 2 row-tiles when possible so the "parallel" row axis can shard
    # across v7x's two TensorCores.
    if rows // tile_rows == 1 and rows % 2 == 0 and (rows // 2) % 8 == 0:
        tile_rows = rows // 2

    assert rows % tile_rows == 0 and cols % tile_cols == 0
    assert rows % 8 == 0 and tile_rows % 8 == 0
    assert tile_cols % 128 == 0 or tile_cols == cols
    # Sub-32-bit inputs pack 16 rows per sublane group: keep blocks compatible.
    if any(jnp.dtype(x.dtype).itemsize < 4 for x in (attention, mask)):
        assert tile_rows % 16 == 0 or tile_rows == rows

    n_r = rows // tile_rows
    n_c = cols // tile_cols
    out_bytes = n_r * n_c * 8 * tile_cols * 4

    partials = pl.pallas_call(
        _df_loss_kernel,
        out_shape=jax.ShapeDtypeStruct((n_r, n_c, 8, tile_cols), jnp.float32),
        grid=(n_r, n_c),
        in_specs=[
            pl.BlockSpec((tile_rows, tile_cols), lambda r, c: (r, c)),
            pl.BlockSpec((tile_rows, tile_cols), lambda r, c: (r, c)),
        ],
        out_specs=pl.BlockSpec((1, 1, 8, tile_cols), lambda r, c: (r, c, 0, 0)),
        compiler_params=pltpu.CompilerParams(
            # Both axes are independent (per-block partial output): megacore
            # can shard either one on v7x.
            dimension_semantics=("parallel", "parallel"),
            vmem_limit_bytes=32 * 1024 * 1024,
        ),
        cost_estimate=pl.CostEstimate(
            flops=4 * rows * cols,
            transcendentals=rows * cols,
            bytes_accessed=(attention.size * jnp.dtype(attention.dtype).itemsize
                            + mask.size * jnp.dtype(mask.dtype).itemsize
                            + out_bytes),
        ),
    )(mask, attention)

    # Tiny final cross-lane/sublane reduce outside the kernel.
    return jnp.sum(partials)


if __name__ == "__main__":
    key = jax.random.PRNGKey(0)
    k1, k2 = jax.random.split(key)

    # Small attention map consistent with loss_fn's 2-D (after squeeze) usage.
    rows, cols = 32, 1024
    # Attention in [0, 0.99) like a softmax map, streamed as bf16 (native dtype).
    attention = jax.random.uniform(
        k1, (rows, cols), dtype=jnp.float32, minval=0.0, maxval=0.99
    ).astype(jnp.bfloat16)
    # Binary mask with a trailing singleton dim (as squeezed in loss_fn),
    # produced in bf16 at the source (exact for {0,1}, halves mask HBM bytes).
    mask = (jax.random.uniform(k2, (rows, cols, 1)) > 0.5).astype(jnp.bfloat16)

    result = df_loss_pallas(attention, mask)
    result = jax.block_until_ready(result)

    # Reference check in plain JAX (same bf16 -> f32 upcast as in-kernel).
    a32 = attention.astype(jnp.float32)
    m32 = jnp.squeeze(mask, axis=-1).astype(jnp.float32)
    ref = jnp.sum(-(1.0 - m32) * jnp.log(1.0 - a32 + EPS))
    assert jnp.allclose(result, ref, rtol=1e-4, atol=1e-2), (result, ref)

    print("KERNEL_OK")
</pallas_src>

<mosaic_0001>
module attributes {stable_mosaic.version = 11 : i64} {
  func.func @_df_loss_kernel(%arg0: i32, %arg1: i32, %arg2: memref<16x1024xbf16, #tpu.memory_space<vmem>>, %arg3: memref<16x1024xbf16, #tpu.memory_space<vmem>>, %arg4: memref<1x1x8x1024xf32, #tpu.memory_space<vmem>>) attributes {dimension_semantics = [#tpu.dimension_semantics<parallel>, #tpu.dimension_semantics<parallel>], iteration_bounds = array<i64: 2, 1>, scalar_prefetch = 0 : i64, scratch_operands = 0 : i64, tpu.core_type = #tpu.core_type<tc>, window_params = [{transform_indices = @transform_0, window_bounds = array<i64: 16, 1024>}, {transform_indices = @transform_1, window_bounds = array<i64: 16, 1024>}, {transform_indices = @transform_2, window_bounds = array<i64: 1, 1, 8, 1024>}]} {
    %c0 = arith.constant 0 : index
    %c0_0 = arith.constant 0 : index
    %0 = vector.load %arg2[%c0, %c0_0] : memref<16x1024xbf16, #tpu.memory_space<vmem>>, vector<16x1024xbf16>
    %1 = arith.extf %0 : vector<16x1024xbf16> to vector<16x1024xf32>
    %c0_1 = arith.constant 0 : index
    %c0_2 = arith.constant 0 : index
    %2 = vector.load %arg3[%c0_1, %c0_2] : memref<16x1024xbf16, #tpu.memory_space<vmem>>, vector<16x1024xbf16>
    %3 = arith.extf %2 : vector<16x1024xbf16> to vector<16x1024xf32>
    %cst = arith.constant 1.000000e+00 : f32
    %4 = vector.broadcast %cst : f32 to vector<16x1024xf32>
    %5 = arith.subf %4, %1 : vector<16x1024xf32>
    %cst_3 = arith.constant 0.000000e+00 : f32
    %6 = vector.broadcast %cst_3 : f32 to vector<16x1024xf32>
    %7 = arith.subf %6, %5 : vector<16x1024xf32>
    %cst_4 = arith.constant 1.000000e+00 : f32
    %8 = vector.broadcast %cst_4 : f32 to vector<16x1024xf32>
    %9 = arith.subf %8, %3 : vector<16x1024xf32>
    %cst_5 = arith.constant 9.99999996E-13 : f32
    %10 = vector.broadcast %cst_5 : f32 to vector<16x1024xf32>
    %11 = arith.addf %9, %10 : vector<16x1024xf32>
    %12 = math.log %11 : vector<16x1024xf32>
    %13 = arith.mulf %7, %12 : vector<16x1024xf32>
    %14 = vector.shape_cast %13 : vector<16x1024xf32> to vector<2x8x1024xf32>
    %cst_6 = arith.constant dense<0.000000e+00> : vector<8x1024xf32>
    %15 = vector.multi_reduction <add>, %14, %cst_6 [0] : vector<2x8x1024xf32> to vector<8x1024xf32>
    %16 = vector.shape_cast %15 : vector<8x1024xf32> to vector<1x1x8x1024xf32>
    %c0_7 = arith.constant 0 : index
    %c0_8 = arith.constant 0 : index
    %c0_9 = arith.constant 0 : index
    %c0_10 = arith.constant 0 : index
    %17 = vector.load %arg4[%c0_7, %c0_8, %c0_9, %c0_10] : memref<1x1x8x1024xf32, #tpu.memory_space<vmem>>, vector<1x1x8x1024xf32>
    tpu.vector_store %arg4[%c0_7, %c0_8, %c0_9, %c0_10], %16 {strides = array<i32>} : memref<1x1x8x1024xf32, #tpu.memory_space<vmem>>, vector<1x1x8x1024xf32>,
    return
  }
  func.func @transform_0(%arg0: i32, %arg1: i32) -> (i32, i32) {
    %c0_i32 = arith.constant 0 : i32
    return %arg0, %arg1 : i32, i32
  }
  func.func @transform_1(%arg0: i32, %arg1: i32) -> (i32, i32) {
    %c0_i32 = arith.constant 0 : i32
    return %arg0, %arg1 : i32, i32
  }
  func.func @transform_2(%arg0: i32, %arg1: i32) -> (i32, i32, i32, i32) {
    %c0_i32 = arith.constant 0 : i32
    %c0_i32_0 = arith.constant 0 : i32
    %c0_i32_1 = arith.constant 0 : i32
    return %arg0, %arg1, %c0_i32, %c0_i32_0 : i32, i32, i32, i32
  }
}

</mosaic_0001>

<llo_original>
// kernel: tpu_custom_call.1
$region0: #{tpu_custom_call.1}
  #allocation0 [shape = 'u32[]', space=smem, size = 0x4, offset = 0x4, fixed_abs, tag = 'smem constant byte address 0x4 - core index']
  #allocation1 [shape = 'u32[144,128]{1,0:T(1,128)}', space=vmem, size = 0x12000, scoped, tag = 'internal scratch']
  %s0 = inlined_call_operand.hbm [shape: bf16[32,1024], index: 0, kind: input, shape index: {}]
  %s1 = inlined_call_operand.hbm [shape: bf16[32,1024], index: 1, kind: input, shape index: {}]
  %s2 = inlined_call_operand.hbm [shape: f32[2,1,8,1024], index: 2, kind: output, shape index: {}]
  %s3 = sld [smem:[#allocation0]]
  $region49: #{tpu_custom_call.1} parent=0
    _
  %s5 = ssub.s32 1, %s3
  %s6 = scalar_select 0, %s5, %s3
  $region1: #{tpu_custom_call.1} parent=0
    #allocation2 [shape = 'u8[65536]{0}', space=vmem, size = 0x10000, scoped, tag = 'input window, operand 0']
    #allocation3 [shape = 's32[2]{0}', space=sflag, size = 0x8, scoped, tag = 'scoped memory for tpu_custom_call.1']
    #allocation4 [shape = 's32[2]{0}', space=sflag, size = 0x8, scoped, tag = 'scoped memory for tpu_custom_call.1']
    #allocation5 [shape = 'u8[65536]{0}', space=vmem, size = 0x10000, scoped, tag = 'input window, operand 1']
    #allocation6 [shape = 's32[2]{0}', space=sflag, size = 0x8, scoped, tag = 'scoped memory for tpu_custom_call.1']
    #allocation7 [shape = 'u8[65536]{0}', space=vmem, size = 0x10000, scoped, tag = 'output window, operand 0']
    %7 = vsyncpa [#allocation3], 0
    %s8 = scalar_lea.sflag [#allocation3], 1
    %9 = vsyncpa %s8, 0
    %10 = vsyncpa [#allocation6], 0
    %s11 = scalar_lea.sflag [#allocation6], 1
    %12 = vsyncpa %s11, 0
    %13 = vsyncpa [#allocation4], 0
    %s14 = scalar_lea.sflag [#allocation4], 1
    %15 = vsyncpa %s14, 0
    loop: start=0, step=1, limit=4
    $region2: #{tpu_custom_call.1} parent=1 // loop_pre_header
      _
    $region3: #{tpu_custom_call.1} parent=1 // loop_header
      %s17 = sphi 0, %s21
      %p18 = scmp.ge.s32.totalorder %s17, 4
      %s24 = sphi 0, %s36
      %s25 = sphi 0, %s32
      %s26 = sphi 0, %s24
      %s27 = sphi 0, %s25
      %s28 = sphi 0, %s26
      %s29 = sphi 0, %s27
      %s41 = sphi 0, %s43
      %s44 = sphi 0, %s41
      %s45 = sphi 0, %s44
      %s61 = sphi 0, %s45
      %s69 = sphi 0, %s71
      %s72 = sphi 0, %s69
      %s73 = sphi 0, %s72
      %s89 = sphi 0, %s73
      %s97 = sphi 0, %s99
      %s100 = sphi 0, %s97
      %s101 = sphi 0, %s100
      %s117 = sphi 0, %s101
    $region4: #{tpu_custom_call.1} parent=1 // loop_header_branch
      %20 = sbr.rel (%p18) target = $region8
    $region5: #{tpu_custom_call.1} parent=1 // loop_body
      %s22 = ssub.s32 %s17, 1
      %s23 = ssub.s32 %s17, 2
      %s30 = sadd.s32 1, %s25
      %p31 = scmp.ge.s32.totalorder %s30, 1
      %s32 = scalar_select %p31, 0, %s30
      %s33 = sadd.s32 1, %s24
      %s34 = scalar_select %p31, %s33, %s24
      %p35 = scmp.ge.s32.totalorder %s34, 2
      %s36 = scalar_select %p35, 0, %s34
      %s37 = ssub.s32 %s24, %s36
      %s38 = ssub.s32 %s25, %s32
      %s39 = sor.u32 %s37, %s38
      %p40 = scmp.eq.s32.totalorder %s39, 0
      %s42 = sadd.s32 %s41, 1
      %s43 = scalar_select %p40, %s41, %s42
      %p46 = pneg %p40
      %p47 = scmp.eq.s32.totalorder %s17, 1
      %p48 = por %p46, %p47
      %p49 = scmp.ne.s32.totalorder %s41, %s44
      %p50 = scmp.eq.s32.totalorder %s17, 0
      %p51 = por %p49, %p50
      %p52 = scmp.ne.s32.totalorder %s41, %s44
      %p53 = scmp.eq.s32.totalorder %s22, 1
      %p54 = por %p52, %p53
      %p55 = scmp.ne.s32.totalorder %s44, %s45
      %p56 = scmp.eq.s32.totalorder %s22, 0
      %p57 = por %p55, %p56
      %p58 = scmp.ne.s32.totalorder %s44, %s45
      %p59 = scmp.eq.s32.totalorder %s23, 1
      %p60 = por %p58, %p59
      %p62 = scmp.ne.s32.totalorder %s45, %s61
      %p63 = scmp.eq.s32.totalorder %s23, 0
      %p64 = por %p62, %p63
      %s65 = ssub.s32 %s24, %s36
      %s66 = ssub.s32 %s25, %s32
      %s67 = sor.u32 %s65, %s66
      %p68 = scmp.eq.s32.totalorder %s67, 0
      %s70 = sadd.s32 %s69, 1
      %s71 = scalar_select %p68, %s69, %s70
      %p74 = pneg %p68
      %p75 = scmp.eq.s32.totalorder %s17, 1
      %p76 = por %p74, %p75
      %p77 = scmp.ne.s32.totalorder %s69, %s72
      %p78 = scmp.eq.s32.totalorder %s17, 0
      %p79 = por %p77, %p78
      %p80 = scmp.ne.s32.totalorder %s69, %s72
      %p81 = scmp.eq.s32.totalorder %s22, 1
      %p82 = por %p80, %p81
      %p83 = scmp.ne.s32.totalorder %s72, %s73
      %p84 = scmp.eq.s32.totalorder %s22, 0
      %p85 = por %p83, %p84
      %p86 = scmp.ne.s32.totalorder %s72, %s73
      %p87 = scmp.eq.s32.totalorder %s23, 1
      %p88 = por %p86, %p87
      %p90 = scmp.ne.s32.totalorder %s73, %s89
      %p91 = scmp.eq.s32.totalorder %s23, 0
      %p92 = por %p90, %p91
      %s93 = ssub.s32 %s24, %s36
      %s94 = ssub.s32 %s25, %s32
      %s95 = sor.u32 %s93, %s94
      %p96 = scmp.eq.s32.totalorder %s95, 0
      %s98 = sadd.s32 %s97, 1
      %s99 = scalar_select %p96, %s97, %s98
      %p102 = pneg %p96
      %p103 = scmp.eq.s32.totalorder %s17, 1
      %p104 = por %p102, %p103
      %p105 = scmp.ne.s32.totalorder %s97, %s100
      %p106 = scmp.eq.s32.totalorder %s17, 0
      %p107 = por %p105, %p106
      %p108 = scmp.ne.s32.totalorder %s97, %s100
      %p109 = scmp.eq.s32.totalorder %s22, 1
      %p110 = por %p108, %p109
      %p111 = scmp.ne.s32.totalorder %s100, %s101
      %p112 = scmp.eq.s32.totalorder %s22, 0
      %p113 = por %p111, %p112
      %p114 = scmp.ne.s32.totalorder %s100, %s101
      %p115 = scmp.eq.s32.totalorder %s23, 1
      %p116 = por %p114, %p115
      %p118 = scmp.ne.s32.totalorder %s101, %s117
      %p119 = scmp.eq.s32.totalorder %s23, 0
      %p120 = por %p118, %p119
      %p121 = scmp.le.s32.totalorder 1, %s17
      %p122 = scmp.lt.s32.totalorder %s17, 3
      %p123 = pnand %p121, %p122
      %p124 = pneg %p123
      // Predicated region
      $region9: #{tpu_custom_call.1} parent=5 // pred_check
        _
      $region10: #{tpu_custom_call.1} parent=5 // pred_check_branch
        %126 = sbr.rel (%p123) target = $region12
      $region11: #{tpu_custom_call.1} parent=5 // pred_region
        %s127 = ssub.s32 %s17, 1
      $region12: #{tpu_custom_call.1} parent=5 // pred_fallthru
        _
      %p128 = scmp.lt.s32.totalorder %s17, 2
      // Predicated region
      $region13: #{tpu_custom_call.1} parent=5 // pred_check
        %p129 = pneg %p128
      $region14: #{tpu_custom_call.1} parent=5 // pred_check_branch
        %131 = sbr.rel (%p129) target = $region16
      $region15: #{tpu_custom_call.1} parent=5 // pred_region
        // Predicated region
        $region17: #{tpu_custom_call.1} parent=15 // pred_check
          %p132 = pneg %p51
        $region18: #{tpu_custom_call.1} parent=15 // pred_check_branch
          %134 = sbr.rel (%p132) target = $region20
        $region19: #{tpu_custom_call.1} parent=15 // pred_region
          %s135 = sand.u32 %s41, 1
          %s136 = scalar_lea.sflag [#allocation3], %s135
          %s137 = sand.u32 %s41, 1
          %s138 = smul.addr %s137, 64
          %s139 = scalar_lea.vmem [#allocation2], %s138
          %s140 = smul.u32 2, %s24
          %s141 = smul.u32 8, %s25
          %s143 = ssub.s32 1024, 1024
          %144 = vsyncadd %s136, %s143
          %s145 = smul.addr %s140, 8
          %s146 = sadd.s32 %s141, %s145
          %s147 = smul.addr %s146, 64
          %s148 = scalar_lea.hbm %s0, %s147
          %s149 = sshll.u32 %s139, 4
          %s150 = int_to_ptr.vmem [resolvable:$true] %s149
          %155 = dma.hbm_to_vmem [thread:$0]  %s148, 1024, %s150, %s136, 512, 512, 32
        $region20: #{tpu_custom_call.1} parent=15 // pred_fallthru
          _
        // Predicated region
        $region21: #{tpu_custom_call.1} parent=15 // pred_check
          %p156 = pneg %p79
        $region22: #{tpu_custom_call.1} parent=15 // pred_check_branch
          %158 = sbr.rel (%p156) target = $region24
        $region23: #{tpu_custom_call.1} parent=15 // pred_region
          %s159 = sand.u32 %s69, 1
          %s160 = scalar_lea.sflag [#allocation6], %s159
          %s161 = sand.u32 %s69, 1
          %s162 = smul.addr %s161, 64
          %s163 = scalar_lea.vmem [#allocation5], %s162
          %s164 = smul.u32 2, %s24
          %s165 = smul.u32 8, %s25
          %s167 = ssub.s32 1024, 1024
          %168 = vsyncadd %s160, %s167
          %s169 = smul.addr %s164, 8
          %s170 = sadd.s32 %s165, %s169
          %s171 = smul.addr %s170, 64
          %s172 = scalar_lea.hbm %s1, %s171
          %s173 = sshll.u32 %s163, 4
          %s174 = int_to_ptr.vmem [resolvable:$true] %s173
          %179 = dma.hbm_to_vmem [thread:$0]  %s172, 1024, %s174, %s160, 512, 512, 32
        $region24: #{tpu_custom_call.1} parent=15 // pred_fallthru
          _
      $region16: #{tpu_custom_call.1} parent=5 // pred_fallthru
        _
      %p180 = scmp.le.s32.totalorder 1, %s17
      %p181 = scmp.lt.s32.totalorder %s17, 3
      %p182 = pnand %p180, %p181
      %p183 = pneg %p182
      // Predicated region
      $region25: #{tpu_custom_call.1} parent=5 // pred_check
        _
      $region26: #{tpu_custom_call.1} parent=5 // pred_check_branch
        %185 = sbr.rel (%p182) target = $region28
      $region27: #{tpu_custom_call.1} parent=5 // pred_region
        %s186 = ssub.s32 %s17, 1
        %s187 = sand.u32 %s44, 1
        %s188 = scalar_lea.sflag [#allocation3], %s187
        %s189 = sand.u32 %s44, 1
        %s190 = smul.addr %s189, 64
        %s191 = scalar_lea.vmem [#allocation2], %s190
        // Predicated region
        $region29: #{tpu_custom_call.1} parent=27 // pred_check
          %p192 = pneg %p57
        $region30: #{tpu_custom_call.1} parent=27 // pred_check_branch
          %194 = sbr.rel (%p192) target = $region32
        $region31: #{tpu_custom_call.1} parent=27 // pred_region
          %195 = dma.done %s188, 1024
        $region32: #{tpu_custom_call.1} parent=27 // pred_fallthru
          _
        %s196 = sand.u32 %s72, 1
        %s197 = scalar_lea.sflag [#allocation6], %s196
        %s198 = sand.u32 %s72, 1
        %s199 = smul.addr %s198, 64
        %s200 = scalar_lea.vmem [#allocation5], %s199
        // Predicated region
        $region33: #{tpu_custom_call.1} parent=27 // pred_check
          %p201 = pneg %p85
        $region34: #{tpu_custom_call.1} parent=27 // pred_check_branch
          %203 = sbr.rel (%p201) target = $region36
        $region35: #{tpu_custom_call.1} parent=27 // pred_region
          %204 = dma.done %s197, 1024
        $region36: #{tpu_custom_call.1} parent=27 // pred_fallthru
          _
        %s205 = sand.u32 %s44, 1
        %s206 = scalar_lea.sflag [#allocation3], %s205
        %s207 = sand.u32 %s44, 1
        %s208 = smul.addr %s207, 64
        %s209 = scalar_lea.vmem [#allocation2], %s208
        %p210 = pneg %p57
        %p211 = pneg %p54
        %s212 = sand.u32 %s72, 1
        %s213 = scalar_lea.sflag [#allocation6], %s212
        %s214 = sand.u32 %s72, 1
        %s215 = smul.addr %s214, 64
        %s216 = scalar_lea.vmem [#allocation5], %s215
        %p217 = pneg %p85
        %p218 = pneg %p82
        %p219 = pneg %p113
        %p220 = pneg %p110
        %s221 = sand.u32 %s100, 1
        %s222 = scalar_lea.sflag [#allocation4], %s221
        %s223 = sand.u32 %s100, 1
        %s224 = smul.addr %s223, 64
        %s225 = scalar_lea.vmem [#allocation7], %s224
        %s226 = smul.u32 2, %s26
        %s227 = smul.u32 8, %s27
        %s228 = smul.u32 2, %s26
        %s229 = smul.u32 8, %s27
        %v230 = vld [vmem:[%s191] sm:$0xff]
        %v231 = vld [vmem:[%s191 + $0x8] sm:$0xff]
        %v232 = vld [vmem:[%s191 + $0x10] sm:$0xff]
        %v233 = vld [vmem:[%s191 + $0x18] sm:$0xff]
        %v234 = vld [vmem:[%s191 + $0x20] sm:$0xff]
        %v235 = vld [vmem:[%s191 + $0x28] sm:$0xff]
        %v236 = vld [vmem:[%s191 + $0x30] sm:$0xff]
        %v237 = vld [vmem:[%s191 + $0x38] sm:$0xff]
        %v238 = vunpack.c.l.bf16 %v230
        %v239 = vunpack.c.h.bf16 %v230
        %v240 = vunpack.c.l.bf16 %v231
        %v241 = vunpack.c.h.bf16 %v231
        %v242 = vunpack.c.l.bf16 %v232
        %v243 = vunpack.c.h.bf16 %v232
        %v244 = vunpack.c.l.bf16 %v233
        %v245 = vunpack.c.h.bf16 %v233
        %v246 = vunpack.c.l.bf16 %v234
        %v247 = vunpack.c.h.bf16 %v234
        %v248 = vunpack.c.l.bf16 %v235
        %v249 = vunpack.c.h.bf16 %v235
        %v250 = vunpack.c.l.bf16 %v236
        %v251 = vunpack.c.h.bf16 %v236
        %v252 = vunpack.c.l.bf16 %v237
        %v253 = vunpack.c.h.bf16 %v237
        %v254 = vld [vmem:[%s200] sm:$0xff]
        %v255 = vld [vmem:[%s200 + $0x8] sm:$0xff]
        %v256 = vld [vmem:[%s200 + $0x10] sm:$0xff]
        %v257 = vld [vmem:[%s200 + $0x18] sm:$0xff]
        %v258 = vld [vmem:[%s200 + $0x20] sm:$0xff]
        %v259 = vld [vmem:[%s200 + $0x28] sm:$0xff]
        %v260 = vld [vmem:[%s200 + $0x30] sm:$0xff]
        %v261 = vld [vmem:[%s200 + $0x38] sm:$0xff]
        %v262 = vunpack.c.l.bf16 %v254
        %v263 = vunpack.c.h.bf16 %v254
        %v264 = vunpack.c.l.bf16 %v255
        %v265 = vunpack.c.h.bf16 %v255
        %v266 = vunpack.c.l.bf16 %v256
        %v267 = vunpack.c.h.bf16 %v256
        %v268 = vunpack.c.l.bf16 %v257
        %v269 = vunpack.c.h.bf16 %v257
        %v270 = vunpack.c.l.bf16 %v258
        %v271 = vunpack.c.h.bf16 %v258
        %v272 = vunpack.c.l.bf16 %v259
        %v273 = vunpack.c.h.bf16 %v259
        %v274 = vunpack.c.l.bf16 %v260
        %v275 = vunpack.c.h.bf16 %v260
        %v276 = vunpack.c.l.bf16 %v261
        %v277 = vunpack.c.h.bf16 %v261
        %v278 = vsub.f32 1.0, %v238
        %v279 = vsub.f32 1.0, %v239
        %v280 = vsub.f32 1.0, %v240
        %v281 = vsub.f32 1.0, %v241
        %v282 = vsub.f32 1.0, %v242
        %v283 = vsub.f32 1.0, %v243
        %v284 = vsub.f32 1.0, %v244
        %v285 = vsub.f32 1.0, %v245
        %v286 = vsub.f32 1.0, %v246
        %v287 = vsub.f32 1.0, %v247
        %v288 = vsub.f32 1.0, %v248
        %v289 = vsub.f32 1.0, %v249
        %v290 = vsub.f32 1.0, %v250
        %v291 = vsub.f32 1.0, %v251
        %v292 = vsub.f32 1.0, %v252
        %v293 = vsub.f32 1.0, %v253
        %v294 = vsub.f32 0.0, %v278
        %v295 = vsub.f32 0.0, %v279
        %v296 = vsub.f32 0.0, %v280
        %v297 = vsub.f32 0.0, %v281
        %v298 = vsub.f32 0.0, %v282
        %v299 = vsub.f32 0.0, %v283
        %v300 = vsub.f32 0.0, %v284
        %v301 = vsub.f32 0.0, %v285
        %v302 = vsub.f32 0.0, %v286
        %v303 = vsub.f32 0.0, %v287
        %v304 = vsub.f32 0.0, %v288
        %v305 = vsub.f32 0.0, %v289
        %v306 = vsub.f32 0.0, %v290
        %v307 = vsub.f32 0.0, %v291
        %v308 = vsub.f32 0.0, %v292
        %v309 = vsub.f32 0.0, %v293
        %v310 = vsub.f32 1.0, %v262
        %v311 = vsub.f32 1.0, %v263
        %v312 = vsub.f32 1.0, %v264
        %v313 = vsub.f32 1.0, %v265
        %v314 = vsub.f32 1.0, %v266
        %v315 = vsub.f32 1.0, %v267
        %v316 = vsub.f32 1.0, %v268
        %v317 = vsub.f32 1.0, %v269
        %v318 = vsub.f32 1.0, %v270
        %v319 = vsub.f32 1.0, %v271
        %v320 = vsub.f32 1.0, %v272
        %v321 = vsub.f32 1.0, %v273
        %v322 = vsub.f32 1.0, %v274
        %v323 = vsub.f32 1.0, %v275
        %v324 = vsub.f32 1.0, %v276
        %v325 = vsub.f32 1.0, %v277
        %v326 = vadd.f32 %v310, 1e-12
        %v327 = vadd.f32 %v311, 1e-12
        %v328 = vadd.f32 %v312, 1e-12
        %v329 = vadd.f32 %v313, 1e-12
        %v330 = vadd.f32 %v314, 1e-12
        %v331 = vadd.f32 %v315, 1e-12
        %v332 = vadd.f32 %v316, 1e-12
        %v333 = vadd.f32 %v317, 1e-12
        %v334 = vadd.f32 %v318, 1e-12
        %v335 = vadd.f32 %v319, 1e-12
        %v336 = vadd.f32 %v320, 1e-12
        %v337 = vadd.f32 %v321, 1e-12
        %v338 = vadd.f32 %v322, 1e-12
        %v339 = vadd.f32 %v323, 1e-12
        %v340 = vadd.f32 %v324, 1e-12
        %v341 = vadd.f32 %v325, 1e-12
        %v342 = vlog2.pop %v326
        %v343 = vmul.f32 %v342, 0.6931472
        %v344 = vlog2.pop %v327
        %v345 = vmul.f32 %v344, 0.6931472
        %v346 = vlog2.pop %v328
        %v347 = vmul.f32 %v346, 0.6931472
        %v348 = vlog2.pop %v329
        %v349 = vmul.f32 %v348, 0.6931472
        %v350 = vlog2.pop %v330
        %v351 = vmul.f32 %v350, 0.6931472
        %v352 = vlog2.pop %v331
        %v353 = vmul.f32 %v352, 0.6931472
        %v354 = vlog2.pop %v332
        %v355 = vmul.f32 %v354, 0.6931472
        %v356 = vlog2.pop %v333
        %v357 = vmul.f32 %v356, 0.6931472
        %v358 = vlog2.pop %v334
        %v359 = vmul.f32 %v358, 0.6931472
        %v360 = vlog2.pop %v335
        %v361 = vmul.f32 %v360, 0.6931472
        %v362 = vlog2.pop %v336
        %v363 = vmul.f32 %v362, 0.6931472
        %v364 = vlog2.pop %v337
        %v365 = vmul.f32 %v364, 0.6931472
        %v366 = vlog2.pop %v338
        %v367 = vmul.f32 %v366, 0.6931472
        %v368 = vlog2.pop %v339
        %v369 = vmul.f32 %v368, 0.6931472
        %v370 = vlog2.pop %v340
        %v371 = vmul.f32 %v370, 0.6931472
        %v372 = vlog2.pop %v341
        %v373 = vmul.f32 %v372, 0.6931472
        %v374 = vmul.f32 %v294, %v343
        %v375 = vmul.f32 %v295, %v345
        %v376 = vmul.f32 %v296, %v347
        %v377 = vmul.f32 %v297, %v349
        %v378 = vmul.f32 %v298, %v351
        %v379 = vmul.f32 %v299, %v353
        %v380 = vmul.f32 %v300, %v355
        %v381 = vmul.f32 %v301, %v357
        %v382 = vmul.f32 %v302, %v359
        %v383 = vmul.f32 %v303, %v361
        %v384 = vmul.f32 %v304, %v363
        %v385 = vmul.f32 %v305, %v365
        %v386 = vmul.f32 %v306, %v367
        %v387 = vmul.f32 %v307, %v369
        %v388 = vmul.f32 %v308, %v371
        %v389 = vmul.f32 %v309, %v373
        %v390 = vadd.f32 %v374, %v382
        %v391 = vadd.f32 %v375, %v383
        %v392 = vadd.f32 %v376, %v384
        %v393 = vadd.f32 %v377, %v385
        %v394 = vadd.f32 %v378, %v386
        %v395 = vadd.f32 %v379, %v387
        %v396 = vadd.f32 %v380, %v388
        %v397 = vadd.f32 %v381, %v389
        %398 = vst [vmem:[%s225] sm:$0xff] %v390
        %399 = vst [vmem:[%s225 + $0x8] sm:$0xff] %v391
        %400 = vst [vmem:[%s225 + $0x10] sm:$0xff] %v392
        %401 = vst [vmem:[%s225 + $0x18] sm:$0xff] %v393
        %402 = vst [vmem:[%s225 + $0x20] sm:$0xff] %v394
        %403 = vst [vmem:[%s225 + $0x28] sm:$0xff] %v395
        %404 = vst [vmem:[%s225 + $0x30] sm:$0xff] %v396
        %405 = vst [vmem:[%s225 + $0x38] sm:$0xff] %v397
        %s406 = sand.u32 %s100, 1
        %s407 = scalar_lea.sflag [#allocation4], %s406
        %s408 = sand.u32 %s100, 1
        %s409 = smul.addr %s408, 64
        %s410 = scalar_lea.vmem [#allocation7], %s409
        // Predicated region
        $region37: #{tpu_custom_call.1} parent=27 // pred_check
          %p411 = pneg %p110
        $region38: #{tpu_custom_call.1} parent=27 // pred_check_branch
          %413 = sbr.rel (%p411) target = $region40
        $region39: #{tpu_custom_call.1} parent=27 // pred_region
          %s415 = ssub.s32 1024, 1024
          %416 = vsyncadd %s407, %s415
          %s417 = smul.addr %s27, 8
          %s418 = smul.addr %s26, 8
          %s419 = sadd.s32 %s417, %s418
          %s420 = smul.addr %s419, 128
          %s421 = scalar_lea.hbm %s2, %s420
          %s423 = sshll.u32 %s410, 4
          %s424 = int_to_ptr.vmem [resolvable:$true] %s423
          %426 = dma.vmem_to_hbm [thread:$0]  %s424, 1024, %s421, %s407
        $region40: #{tpu_custom_call.1} parent=27 // pred_fallthru
          _
      $region28: #{tpu_custom_call.1} parent=5 // pred_fallthru
        _
      %p427 = scmp.le.s32.totalorder 2, %s17
      // Predicated region
      $region41: #{tpu_custom_call.1} parent=5 // pred_check
        %p428 = pneg %p427
      $region42: #{tpu_custom_call.1} parent=5 // pred_check_branch
        %430 = sbr.rel (%p428) target = $region44
      $region43: #{tpu_custom_call.1} parent=5 // pred_region
        %s431 = ssub.s32 %s17, 2
        // Predicated region
        $region45: #{tpu_custom_call.1} parent=43 // pred_check
          %p432 = pneg %p116
        $region46: #{tpu_custom_call.1} parent=43 // pred_check_branch
          %434 = sbr.rel (%p432) target = $region48
        $region47: #{tpu_custom_call.1} parent=43 // pred_region
          %s435 = sand.u32 %s101, 1
          %s436 = scalar_lea.sflag [#allocation4], %s435
          %s437 = sand.u32 %s101, 1
          %s438 = smul.addr %s437, 64
          %s439 = scalar_lea.vmem [#allocation7], %s438
          %440 = dma.done %s436, 1024
        $region48: #{tpu_custom_call.1} parent=43 // pred_fallthru
          _
      $region44: #{tpu_custom_call.1} parent=5 // pred_fallthru
        _
    $region6: #{tpu_custom_call.1} parent=1 // loop_footer
      %s21 = sadd.s32 1, %s17
    $region7: #{tpu_custom_call.1} parent=1 // loop_footer_branch
      %16 = sbr.rel target = $region3
    $region8: #{tpu_custom_call.1} parent=1 // loop_exit
      _
    %441 = vsyncpa [#allocation3], 1
    %s442 = scalar_lea.sflag [#allocation3], 1
    %443 = vsyncpa %s442, 1
    %444 = vsyncpa [#allocation6], 1
    %s445 = scalar_lea.sflag [#allocation6], 1
    %446 = vsyncpa %s445, 1
    %447 = vsyncpa [#allocation4], 1
    %s448 = scalar_lea.sflag [#allocation4], 1
    %449 = vsyncpa %s448, 1

</llo_original>
